<compile_context>
chip_gen: v7x
topology: tpu7x:2x2x1
jax: 0.10.0
libtpu: 0.0.40
codegen_flags: <defaults>
</compile_context>

<pallas_src>
import numpy as np
import jax
import jax.numpy as jnp
from jax import lax
from jax.experimental import pallas as pl
from jax.experimental.pallas import tpu as pltpu


# ----------------------------- Pallas kernel ------------------------------ #

def _packed_gram_kernel(x_ref, w_ref, t_ref, g_ref):
    # x_ref: (Pb, m, C)  block of spatial positions (all samples, all features)
    # w_ref: (m, N)      packed per-sample class weights (resident, DMA'd once)
    # t_ref: (C, N)      0/1 replication matrix, T[d, k*C + d] = 1
    # g_ref: (Pb, C, N)  packed masked Gram matrices, N % 128 == 0 (lane-dense)
    w = w_ref[...]                       # loop-invariant, hoisted
    t = t_ref[...]
    pb = x_ref.shape[0]                  # static

    def body(p, carry):
        xp = x_ref[p]                                               # (m, C)
        # replicate the feature axis across the packed class axis on the MXU
        x_rep = jnp.dot(xp, t, preferred_element_type=jnp.float32)  # (m, N)
        y = x_rep * w                                               # VPU masking
        # (C, N) = xp^T @ y : all per-class Grams + the full Gram in one matmul
        g = lax.dot_general(xp, y, (((0,), (0,)), ((), ())),
                            preferred_element_type=jnp.float32)
        g_ref[p] = g
        return carry

    lax.fori_loop(0, pb, body, 0)


def _vmem_capacity_bytes():
    try:
        return int(pltpu.get_tpu_info().vmem_capacity_bytes)
    except Exception:
        return 64 * 1024 * 1024          # conservative (v7x per-TC)


def packed_masked_grams(X, w_packed, t_rep):
    """X: (P, m, C) f32, w_packed: (m, N) f32, t_rep: (C, N) f32 -> (P, C, N)."""
    P, m, C = X.shape
    N = w_packed.shape[1]

    # Generation-aware tile sizing (v7x 64 MiB VMEM vs v5e/v6e 128 MiB).
    vmem_cap = _vmem_capacity_bytes()
    vmem_limit = int(min(vmem_cap * 3 // 4, 96 * 1024 * 1024))
    budget = vmem_limit // 2
    fixed = 4 * (2 * m * N + 2 * C * N)                # resident W, T buffers
    per_p = 4 * (2 * m * C + 2 * C * N + 2 * m * N)    # x blk, out blk, matmul temps
    pb = int(max(1, min((budget - fixed) // per_p, P, 256)))

    P_pad = ((P + pb - 1) // pb) * pb
    if P_pad != P:
        X = jnp.pad(X, ((0, P_pad - P), (0, 0), (0, 0)))

    flops = int(2 * 2 * P_pad * m * C * N)             # two matmuls per position
    bytes_accessed = int(4 * (P_pad * m * C + m * N + C * N + P_pad * C * N))

    out = pl.pallas_call(
        _packed_gram_kernel,
        out_shape=jax.ShapeDtypeStruct((P_pad, C, N), jnp.float32),
        grid_spec=pltpu.PrefetchScalarGridSpec(
            num_scalar_prefetch=0,
            grid=(P_pad // pb,),
            in_specs=[
                pl.BlockSpec((pb, m, C), lambda i: (i, 0, 0)),
                pl.BlockSpec((m, N), lambda i: (0, 0)),   # constant -> DMA'd once
                pl.BlockSpec((C, N), lambda i: (0, 0)),   # constant -> DMA'd once
            ],
            out_specs=pl.BlockSpec((pb, C, N), lambda i: (i, 0, 0)),
        ),
        compiler_params=pltpu.CompilerParams(
            dimension_semantics=("parallel",),            # 2x on v7x, no-op elsewhere
            vmem_limit_bytes=vmem_limit),
        cost_estimate=pl.CostEstimate(flops=flops, transcendentals=0,
                                      bytes_accessed=bytes_accessed),
    )(X, w_packed, t_rep)
    return out[:P]


# --------------------------- MCR2 loss wrapper ----------------------------- #

def mcr2_loss_pallas(cls_score, label, eps, num_classes):
    """Returns (loss_expd - loss_comp, loss_expd, loss_comp), matching the
    PyTorch mcr2_loss semantics for 2-D / 3-D / 4-D inputs."""
    Z = cls_score.astype(jnp.float32)
    label = label.astype(jnp.int32)
    if Z.ndim == 2:                        # (m, d)      -> compute_loss_vec
        m, C = Z.shape
        X = Z.reshape(1, m, C)
    elif Z.ndim == 3:                      # (m, C, T)   -> compute_loss_1d
        m, C, _T = Z.shape
        X = jnp.transpose(Z, (2, 0, 1))
    elif Z.ndim == 4:                      # (m, C, H, W)-> compute_loss_2d
        m, C, H, Wsp = Z.shape
        X = jnp.transpose(Z.reshape(m, C, H * Wsp), (2, 0, 1))
    else:
        raise NotImplementedError
    P = X.shape[0]
    K = num_classes

    onehot = (label[None, :] == jnp.arange(K, dtype=jnp.int32)[:, None]
              ).astype(jnp.float32)                                   # (K, m)
    counts = onehot.sum(axis=1)                                       # (K,)
    # append an all-ones "class" so the full Gram comes out of the same matmul
    onehot_ext = jnp.concatenate(
        [onehot, jnp.ones((1, m), jnp.float32)], axis=0)              # (K+1, m)

    n_used = (K + 1) * C
    N = max(128, ((n_used + 127) // 128) * 128)                       # lane-dense
    # w_packed[i, k*C + d] = onehot_ext[k, i];   t_rep[d, k*C + d] = 1
    w_packed = jnp.pad(jnp.repeat(onehot_ext.T, C, axis=1),
                       ((0, 0), (0, N - n_used)))                     # (m, N)
    t_rep = jnp.pad(jnp.tile(jnp.eye(C, dtype=jnp.float32), (1, K + 1)),
                    ((0, 0), (0, N - n_used)))                        # (C, N)

    Gp = packed_masked_grams(X, w_packed, t_rep)                      # (P, C, N)
    G_all = Gp[:, :, K * C:(K + 1) * C]                               # (P, C, C)
    G_cls = Gp[:, :, :K * C].reshape(P, C, K, C).transpose(2, 0, 1, 3)  # (K,P,C,C)

    # expansion term (full Gram over all samples, computed inside the kernel)
    alpha = C / (m * eps)
    sgn, ld = jnp.linalg.slogdet(alpha * G_all)
    loss_expd = (sgn * ld).sum() / (2.0 * P)

    # compression term; empty classes get identity substituted before slogdet
    present = counts > 0
    safe_counts = jnp.maximum(counts, 1.0)
    alpha_j = C / (safe_counts * eps)                                 # (K,)
    Mj = alpha_j[:, None, None, None] * G_cls
    Mj = jnp.where(present[:, None, None, None], Mj,
                   jnp.eye(C, dtype=jnp.float32)[None, None])
    sgn_j, ld_j = jnp.linalg.slogdet(Mj)
    ld_sum = (sgn_j * ld_j).sum(axis=1)                               # (K,)
    loss_comp = jnp.sum(jnp.where(present,
                                  (counts / m) * ld_sum / (2.0 * P), 0.0))
    return loss_expd - loss_comp, loss_expd, loss_comp


class MCR2LossPallas:
    """JAX/Pallas equivalent of the PyTorch MCR2Loss module (no learned params)."""

    def __init__(self, eps=0.01, loss_weight=1.0, expd_weight=1.0,
                 comp_weight=1.0, return_all=False, num_classes=2):
        self.eps = eps
        self.loss_weight = loss_weight
        self.expd_weight = expd_weight
        self.comp_weight = comp_weight
        self.return_all = return_all
        self.num_classes = num_classes

    def __call__(self, cls_score, label):
        _, loss_expd, loss_comp = mcr2_loss_pallas(
            cls_score, label, self.eps, self.num_classes)
        loss_mcr2 = loss_comp * self.comp_weight - loss_expd * self.expd_weight
        if self.return_all:
            return (loss_mcr2,
                    loss_expd * self.expd_weight,
                    loss_comp * self.comp_weight)
        return loss_mcr2


# ------------------------------ references --------------------------------- #

def _ref_vec_numpy(Z, y, eps, num_classes):
    Z = np.asarray(Z, dtype=np.float64)
    y = np.asarray(y)
    m, d = Z.shape
    c = d / (m * eps)
    sgn, ld = np.linalg.slogdet(c * (Z.T @ Z))
    le = sgn * ld / 2.0
    lc = 0.0
    for j in range(num_classes):
        Zj = Z[y == j]
        mj = Zj.shape[0]
        if mj == 0:
            continue
        cj = d / (mj * eps)
        sgn, ld = np.linalg.slogdet(cj * (Zj.T @ Zj))
        lc += sgn * ld * mj / (2.0 * m)
    return le, lc


def _ref_2d_numpy(V, y, eps, num_classes):
    V = np.asarray(V, dtype=np.float64)
    y = np.asarray(y)
    m, C, H, W = V.shape
    Vf = V.reshape(m, C, H * W)

    def term(Vs):
        ms = Vs.shape[0]
        a = C / (ms * eps)
        s = 0.0
        for p in range(H * W):
            sgn, ld = np.linalg.slogdet(a * (Vs[:, :, p].T @ Vs[:, :, p]))
            s += sgn * ld
        return s / (2.0 * H * W)

    le = term(Vf)
    lc = 0.0
    for j in range(num_classes):
        sel = (y == j)
        mj = int(sel.sum())
        if mj == 0:
            continue
        lc += (mj / m) * term(Vf[sel])
    return le, lc


# --------------------------------- main ------------------------------------ #

if __name__ == "__main__":
    key = jax.random.PRNGKey(0)
    k1, k2 = jax.random.split(key)

    # --- 2-D "vec" case: cls_score (m=16, d=8), 2 classes of 8 samples each ---
    Z = jax.random.normal(k1, (16, 8), dtype=jnp.float32)
    y = jnp.array([0] * 8 + [1] * 8, dtype=jnp.int32)

    mod = MCR2LossPallas(eps=0.01, num_classes=2, return_all=True)
    loss, le, lc = mod(Z, y)
    jax.block_until_ready((loss, le, lc))
    le_ref, lc_ref = _ref_vec_numpy(Z, y, 0.01, 2)
    assert np.allclose(float(le), le_ref, rtol=1e-3, atol=1e-3), (float(le), le_ref)
    assert np.allclose(float(lc), lc_ref, rtol=1e-3, atol=1e-3), (float(lc), lc_ref)
    assert np.isfinite(float(loss))

    # --- same data, num_classes=3 with class 2 empty (NaN-hazard path) ---
    loss_e, le_e, lc_e = MCR2LossPallas(eps=0.01, num_classes=3,
                                        return_all=True)(Z, y)
    jax.block_until_ready((loss_e, le_e, lc_e))
    assert np.isfinite(float(loss_e)) and np.isfinite(float(lc_e))
    assert np.allclose(float(le_e), le_ref, rtol=1e-3, atol=1e-3)
    assert np.allclose(float(lc_e), lc_ref, rtol=1e-3, atol=1e-3)

    # --- 4-D NCHW case: cls_score (m=16, C=4, H=8, W=8) -> P = 64 positions ---
    V = jax.random.normal(k2, (16, 4, 8, 8), dtype=jnp.float32)
    y2 = jnp.array([0] * 8 + [1] * 8, dtype=jnp.int32)
    loss2, le2, lc2 = MCR2LossPallas(eps=0.01, num_classes=2,
                                     return_all=True)(V, y2)
    jax.block_until_ready((loss2, le2, lc2))
    le2_ref, lc2_ref = _ref_2d_numpy(V, y2, 0.01, 2)
    assert np.allclose(float(le2), le2_ref, rtol=1e-3, atol=1e-3), (float(le2), le2_ref)
    assert np.allclose(float(lc2), lc2_ref, rtol=1e-3, atol=1e-3), (float(lc2), lc2_ref)
    assert np.isfinite(float(loss2))

    print("KERNEL_OK")
</pallas_src>

<mosaic_0001>
module attributes {stable_mosaic.version = 11 : i64} {
  func.func @_packed_gram_kernel(%arg0: i32, %arg1: memref<1x16x8xf32, #tpu.memory_space<vmem>>, %arg2: memref<16x128xf32, #tpu.memory_space<vmem>>, %arg3: memref<8x128xf32, #tpu.memory_space<vmem>>, %arg4: memref<1x8x128xf32, #tpu.memory_space<vmem>>) attributes {dimension_semantics = [#tpu.dimension_semantics<parallel>], iteration_bounds = array<i64: 1>, scalar_prefetch = 0 : i64, scratch_operands = 0 : i64, tpu.core_type = #tpu.core_type<tc>, window_params = [{transform_indices = @transform_0, window_bounds = array<i64: 1, 16, 8>}, {pipeline_mode = #tpu.pipeline_mode<synchronous>, transform_indices = @transform_1, window_bounds = array<i64: 16, 128>}, {pipeline_mode = #tpu.pipeline_mode<synchronous>, transform_indices = @transform_2, window_bounds = array<i64: 8, 128>}, {transform_indices = @transform_3, window_bounds = array<i64: 1, 8, 128>}]} {
    %c0 = arith.constant 0 : index
    %c0_0 = arith.constant 0 : index
    %0 = vector.load %arg2[%c0, %c0_0] : memref<16x128xf32, #tpu.memory_space<vmem>>, vector<16x128xf32>
    %c0_1 = arith.constant 0 : index
    %c0_2 = arith.constant 0 : index
    %1 = vector.load %arg3[%c0_1, %c0_2] : memref<8x128xf32, #tpu.memory_space<vmem>>, vector<8x128xf32>
    %c0_i32 = arith.constant 0 : i32
    %2 = arith.index_cast %c0_i32 : i32 to index
    %c0_3 = arith.constant 0 : index
    %c0_4 = arith.constant 0 : index
    %3 = vector.load %arg1[%2, %c0_3, %c0_4] : memref<1x16x8xf32, #tpu.memory_space<vmem>>, vector<1x16x8xf32>
    %4 = vector.shape_cast %3 : vector<1x16x8xf32> to vector<16x8xf32>
    %cst = arith.constant dense<0.000000e+00> : vector<16x128xf32>
    %5 = tpu.matmul %4, %1, %cst {dimension_numbers = #tpu.dot_dimension_numbers<[1], [0], [0], [1], [0, 0, 1, 1], [], []>} : vector<16x8xf32>, vector<8x128xf32>, vector<16x128xf32> -> vector<16x128xf32>
    %6 = arith.mulf %5, %0 : vector<16x128xf32>
    %cst_5 = arith.constant dense<0.000000e+00> : vector<8x128xf32>
    %7 = tpu.matmul %4, %6, %cst_5 {dimension_numbers = #tpu.dot_dimension_numbers<[0], [0], [1], [1], [0, 1, 1, 1], [], []>} : vector<16x8xf32>, vector<16x128xf32>, vector<8x128xf32> -> vector<8x128xf32>
    %8 = arith.index_cast %c0_i32 : i32 to index
    %c0_6 = arith.constant 0 : index
    %c0_7 = arith.constant 0 : index
    %9 = vector.load %arg4[%8, %c0_6, %c0_7] : memref<1x8x128xf32, #tpu.memory_space<vmem>>, vector<1x8x128xf32>
    %10 = vector.shape_cast %9 : vector<1x8x128xf32> to vector<8x128xf32>
    %11 = vector.shape_cast %7 : vector<8x128xf32> to vector<1x8x128xf32>
    tpu.vector_store %arg4[%8, %c0_6, %c0_7], %11 {strides = array<i32>} : memref<1x8x128xf32, #tpu.memory_space<vmem>>, vector<1x8x128xf32>,
    %c1_i32 = arith.constant 1 : i32
    return
  }
  func.func @transform_0(%arg0: i32) -> (i32, i32, i32) {
    %c0_i32 = arith.constant 0 : i32
    %c0_i32_0 = arith.constant 0 : i32
    %c0_i32_1 = arith.constant 0 : i32
    return %arg0, %c0_i32, %c0_i32_0 : i32, i32, i32
  }
  func.func @transform_1(%arg0: i32) -> (i32, i32) {
    %c0_i32 = arith.constant 0 : i32
    %c0_i32_0 = arith.constant 0 : i32
    %c0_i32_1 = arith.constant 0 : i32
    return %c0_i32, %c0_i32_0 : i32, i32
  }
  func.func @transform_2(%arg0: i32) -> (i32, i32) {
    %c0_i32 = arith.constant 0 : i32
    %c0_i32_0 = arith.constant 0 : i32
    %c0_i32_1 = arith.constant 0 : i32
    return %c0_i32, %c0_i32_0 : i32, i32
  }
  func.func @transform_3(%arg0: i32) -> (i32, i32, i32) {
    %c0_i32 = arith.constant 0 : i32
    %c0_i32_0 = arith.constant 0 : i32
    %c0_i32_1 = arith.constant 0 : i32
    return %arg0, %c0_i32, %c0_i32_0 : i32, i32, i32
  }
}

</mosaic_0001>

<llo_original>
// kernel: tpu_custom_call.1
$region0: #{tpu_custom_call.1}
  #allocation0 [shape = 'u32[]', space=smem, size = 0x4, offset = 0x4, fixed_abs, tag = 'smem constant byte address 0x4 - core index']
  #allocation1 [shape = 'u32[144,128]{1,0:T(1,128)}', space=vmem, size = 0x12000, scoped, tag = 'internal scratch']
  %s0 = inlined_call_operand.vmem [shape: f32[1,16,8], index: 0, kind: input, shape index: {}]
  %s1 = inlined_call_operand.vmem [shape: f32[16,128], index: 1, kind: input, shape index: {}]
  %s2 = inlined_call_operand.vmem [shape: f32[8,128], index: 2, kind: input, shape index: {}]
  %s3 = inlined_call_operand.hbm [shape: f32[1,8,128], index: 3, kind: output, shape index: {}]
  %s4 = sld [smem:[#allocation0]]
  $region22: #{tpu_custom_call.1} parent=0
    _
  %s6 = ssub.s32 1, %s4
  %s7 = scalar_select 0, %s6, %s4
  $region1: #{tpu_custom_call.1} parent=0
    #allocation2 [shape = 'u8[4096]{0}', space=vmem, size = 0x1000, scoped, tag = 'output window, operand 0, single buffered']
    #allocation3 [shape = 's32[1]{0}', space=sflag, size = 0x4, scoped, tag = 'scoped memory for tpu_custom_call.1']
    %8 = vsyncpa [#allocation3], 0
    // Predicated region
    $region2: #{tpu_custom_call.1} parent=1 // pred_check
      _
    $region3: #{tpu_custom_call.1} parent=1 // pred_check_branch
      %10 = sbr.rel (0) target = $region5
    $region4: #{tpu_custom_call.1} parent=1 // pred_region
      _
    $region5: #{tpu_custom_call.1} parent=1 // pred_fallthru
      _
    // Predicated region
    $region6: #{tpu_custom_call.1} parent=1 // pred_check
      _
    $region7: #{tpu_custom_call.1} parent=1 // pred_check_branch
      %12 = sbr.rel (0) target = $region9
    $region8: #{tpu_custom_call.1} parent=1 // pred_region
      _
    $region9: #{tpu_custom_call.1} parent=1 // pred_fallthru
      _
    // Predicated region
    $region10: #{tpu_custom_call.1} parent=1 // pred_check
      _
    $region11: #{tpu_custom_call.1} parent=1 // pred_check_branch
      %14 = sbr.rel (0) target = $region13
    $region12: #{tpu_custom_call.1} parent=1 // pred_region
      _
    $region13: #{tpu_custom_call.1} parent=1 // pred_fallthru
      _
    %v15 = vld [vmem:[%s1] sm:$0xff]
    %v16 = vld [vmem:[%s1 + $0x8] sm:$0xff]
    %v17 = vld [vmem:[%s2] sm:$0xff]
    %v18 = vld [vmem:[%s0] sm:$0xff]
    %v19 = vld [vmem:[%s0 + $0x8] sm:$0xff]
    %vm20 = vcmask 64512
    %v22 = vsel %vm20, %v18, 0
    %v25 = vsel %vm20, %v19, 0
    %27 = vmatprep.subr.mxu0 0.0
    %28 = vmatpush1.msra.mxu0 %v17
    %29 = vmatprep.subr.mxu0 0.0
    %30 = vmatpush1.msra.mxu0 0.0
    %31 = vmatprep.subr.mxu0 0.0
    %32 = vmatpush1.msra.mxu0 0.0
    %33 = vmatprep.subr.mxu0 0.0
    %34 = vmatpush1.msra.mxu0 0.0
    %35 = vmatprep.subr.mxu0 0.0
    %36 = vmatpush1.msra.mxu0 0.0
    %37 = vmatprep.subr.mxu0 0.0
    %38 = vmatpush1.msra.mxu0 0.0
    %39 = vmatprep.subr.mxu0 0.0
    %40 = vmatpush1.msra.mxu0 0.0
    %41 = vmatprep.subr.mxu0 0.0
    %42 = vmatpush1.msra.mxu0 0.0
    %43 = vmatprep.subr.mxu0 0.0
    %44 = vmatpush1.msra.mxu0 0.0
    %45 = vmatprep.subr.mxu0 0.0
    %46 = vmatpush1.msra.mxu0 0.0
    %47 = vmatprep.subr.mxu0 0.0
    %48 = vmatpush1.msra.mxu0 0.0
    %49 = vmatprep.subr.mxu0 0.0
    %50 = vmatpush1.msra.mxu0 0.0
    %51 = vmatprep.subr.mxu0 0.0
    %52 = vmatpush1.msra.mxu0 0.0
    %53 = vmatprep.subr.mxu0 0.0
    %54 = vmatpush1.msra.mxu0 0.0
    %55 = vmatprep.subr.mxu0 0.0
    %56 = vmatpush1.msra.mxu0 0.0
    %57 = vmatprep.subr.mxu0 0.0
    %58 = vmatpush1.msra.mxu0 0.0
    %59 = vmatprep.subr.mxu0 0.0
    %60 = vmatpush1.msra.mxu0 0.0
    %61 = vmatprep.subr.mxu0 0.0
    %62 = vmatpush1.msra.mxu0 0.0
    %63 = vmatprep.subr.mxu0 0.0
    %64 = vmatpush1.msra.mxu0 0.0
    %65 = vmatprep.subr.mxu0 0.0
    %66 = vmatpush1.msra.mxu0 0.0
    %67 = vmatprep.subr.mxu0 0.0
    %68 = vmatpush1.msra.mxu0 0.0
    %69 = vmatprep.subr.mxu0 0.0
    %70 = vmatpush1.msra.mxu0 0.0
    %71 = vmatprep.subr.mxu0 0.0
    %72 = vmatpush1.msra.mxu0 0.0
    %73 = vmatprep.subr.mxu0 0.0
    %74 = vmatpush1.msra.mxu0 0.0
    %75 = vmatprep.subr.mxu0 0.0
    %76 = vmatpush1.msra.mxu0 0.0
    %77 = vmatprep.subr.mxu0 0.0
    %78 = vmatpush1.msra.mxu0 0.0
    %79 = vmatprep.subr.mxu0 0.0
    %80 = vmatpush1.msra.mxu0 0.0
    %81 = vmatprep.subr.mxu0 0.0
    %82 = vmatpush1.msra.mxu0 0.0
    %83 = vmatprep.subr.mxu0 0.0
    %84 = vmatpush1.msra.mxu0 0.0
    %85 = vmatprep.subr.mxu0 0.0
    %86 = vmatpush1.msra.mxu0 0.0
    %87 = vmatprep.subr.mxu0 0.0
    %88 = vmatpush1.msra.mxu0 0.0
    %89 = vmatprep.subr.mxu0 0.0
    %90 = vmatpush1.msra.mxu0 0.0
    %91 = vmatprep.mubr.f32.mxu0 0.0
    %92 = vmatmul.mubr.f32.gmra.mrb[0].mxu0 %v22
    %v93 = vpop.f32.mrb[0].mxu0
    %v94 = vadd.f32 0.0, %v93
    %v95 = vpop.f32.mrb[0].mxu0
    %96 = vmatprep.mubr.f32.mxu0 0.0
    %97 = vmatmul.mubr.f32.gmra.mrb[0].mxu0 %v25
    %v98 = vpop.f32.mrb[0].mxu0
    %v99 = vadd.f32 0.0, %v98
    %v100 = vpop.f32.mrb[0].mxu0
    %101 = vdwg.mxu0
    %v102 = vmul.f32 %v94, %v15
    %v103 = vmul.f32 %v99, %v16
    %104 = vxpose.xlu0.b32.start [1/16] %v18, 128
    %105 = vxpose.xlu0.b32.cont [2/16] %v19, 128
    %106 = vxpose.xlu0.b32.cont [3/16] 0.0, 128
    %107 = vxpose.xlu0.b32.cont [4/16] 0.0, 128
    %108 = vxpose.xlu0.b32.cont [5/16] 0.0, 128
    %109 = vxpose.xlu0.b32.cont [6/16] 0.0, 128
    %110 = vxpose.xlu0.b32.cont [7/16] 0.0, 128
    %111 = vxpose.xlu0.b32.cont [8/16] 0.0, 128
    %112 = vxpose.xlu0.b32.cont [9/16] 0.0, 128
    %113 = vxpose.xlu0.b32.cont [10/16] 0.0, 128
    %114 = vxpose.xlu0.b32.cont [11/16] 0.0, 128
    %115 = vxpose.xlu0.b32.cont [12/16] 0.0, 128
    %116 = vxpose.xlu0.b32.cont [13/16] 0.0, 128
    %117 = vxpose.xlu0.b32.cont [14/16] 0.0, 128
    %118 = vxpose.xlu0.b32.cont [15/16] 0.0, 128
    %119 = vxpose.xlu0.b32.end [16/16] 0.0, 128
    %v120 = vpop.trf.xlu0
    %v121 = vpop.trf.xlu0
    %v122 = vpop.trf.xlu0
    %v123 = vpop.trf.xlu0
    %v124 = vpop.trf.xlu0
    %v125 = vpop.trf.xlu0
    %v126 = vpop.trf.xlu0
    %v127 = vpop.trf.xlu0
    %v128 = vpop.trf.xlu0
    %v129 = vpop.trf.xlu0
    %v130 = vpop.trf.xlu0
    %v131 = vpop.trf.xlu0
    %v132 = vpop.trf.xlu0
    %v133 = vpop.trf.xlu0
    %v134 = vpop.trf.xlu0
    %v135 = vpop.trf.xlu0
    %vm136 = vcmask 130048
    %v138 = vsel %vm136, %v120, 0
    %140 = vmatprep.subr.mxu0 0.0
    %141 = vmatpush1.msra.mxu0 %v102
    %142 = vmatprep.subr.mxu0 0.0
    %143 = vmatpush1.msra.mxu0 %v103
    %144 = vmatprep.subr.mxu0 0.0
    %145 = vmatpush1.msra.mxu0 0.0
    %146 = vmatprep.subr.mxu0 0.0
    %147 = vmatpush1.msra.mxu0 0.0
    %148 = vmatprep.subr.mxu0 0.0
    %149 = vmatpush1.msra.mxu0 0.0
    %150 = vmatprep.subr.mxu0 0.0
    %151 = vmatpush1.msra.mxu0 0.0
    %152 = vmatprep.subr.mxu0 0.0
    %153 = vmatpush1.msra.mxu0 0.0
    %154 = vmatprep.subr.mxu0 0.0
    %155 = vmatpush1.msra.mxu0 0.0
    %156 = vmatprep.subr.mxu0 0.0
    %157 = vmatpush1.msra.mxu0 0.0
    %158 = vmatprep.subr.mxu0 0.0
    %159 = vmatpush1.msra.mxu0 0.0
    %160 = vmatprep.subr.mxu0 0.0
    %161 = vmatpush1.msra.mxu0 0.0
    %162 = vmatprep.subr.mxu0 0.0
    %163 = vmatpush1.msra.mxu0 0.0
    %164 = vmatprep.subr.mxu0 0.0
    %165 = vmatpush1.msra.mxu0 0.0
    %166 = vmatprep.subr.mxu0 0.0
    %167 = vmatpush1.msra.mxu0 0.0
    %168 = vmatprep.subr.mxu0 0.0
    %169 = vmatpush1.msra.mxu0 0.0
    %170 = vmatprep.subr.mxu0 0.0
    %171 = vmatpush1.msra.mxu0 0.0
    %172 = vmatprep.subr.mxu0 0.0
    %173 = vmatpush1.msra.mxu0 0.0
    %174 = vmatprep.subr.mxu0 0.0
    %175 = vmatpush1.msra.mxu0 0.0
    %176 = vmatprep.subr.mxu0 0.0
    %177 = vmatpush1.msra.mxu0 0.0
    %178 = vmatprep.subr.mxu0 0.0
    %179 = vmatpush1.msra.mxu0 0.0
    %180 = vmatprep.subr.mxu0 0.0
    %181 = vmatpush1.msra.mxu0 0.0
    %182 = vmatprep.subr.mxu0 0.0
    %183 = vmatpush1.msra.mxu0 0.0
    %184 = vmatprep.subr.mxu0 0.0
    %185 = vmatpush1.msra.mxu0 0.0
    %186 = vmatprep.subr.mxu0 0.0
    %187 = vmatpush1.msra.mxu0 0.0
    %188 = vmatprep.subr.mxu0 0.0
    %189 = vmatpush1.msra.mxu0 0.0
    %190 = vmatprep.subr.mxu0 0.0
    %191 = vmatpush1.msra.mxu0 0.0
    %192 = vmatprep.subr.mxu0 0.0
    %193 = vmatpush1.msra.mxu0 0.0
    %194 = vmatprep.subr.mxu0 0.0
    %195 = vmatpush1.msra.mxu0 0.0
    %196 = vmatprep.subr.mxu0 0.0
    %197 = vmatpush1.msra.mxu0 0.0
    %198 = vmatprep.subr.mxu0 0.0
    %199 = vmatpush1.msra.mxu0 0.0
    %200 = vmatprep.subr.mxu0 0.0
    %201 = vmatpush1.msra.mxu0 0.0
    %202 = vmatprep.subr.mxu0 0.0
    %203 = vmatpush1.msra.mxu0 0.0
    %204 = vmatprep.mubr.f32.mxu0 0.0
    %205 = vmatmul.mubr.f32.gmra.mrb[0].mxu0 %v138
    %v206 = vpop.f32.mrb[0].mxu0
    %v207 = vadd.f32 0.0, %v206
    %v208 = vpop.f32.mrb[0].mxu0
    %209 = vdwg.mxu0
    %210 = vst [vmem:[#allocation2] sm:$0xff] %v207
    // Predicated region
    $region14: #{tpu_custom_call.1} parent=1 // pred_check
      _
    $region15: #{tpu_custom_call.1} parent=1 // pred_check_branch
      %212 = sbr.rel (0) target = $region17
    $region16: #{tpu_custom_call.1} parent=1 // pred_region
      %s214 = ssub.s32 128, 128
      %215 = vsyncadd [#allocation3], %s214
      %s217 = sshll.u32 [#allocation2], 4
      %s218 = int_to_ptr.vmem [resolvable:$true] %s217
      %220 = dma.vmem_to_hbm [thread:$0]  %s218, 128, %s3, [#allocation3]
    $region17: #{tpu_custom_call.1} parent=1 // pred_fallthru
      _
    // Predicated region
    $region18: #{tpu_custom_call.1} parent=1 // pred_check
      _
    $region19: #{tpu_custom_call.1} parent=1 // pred_check_branch
      %222 = sbr.rel (0) target = $region21
    $region20: #{tpu_custom_call.1} parent=1 // pred_region
      %223 = dma.done [#allocation3], 128
    $region21: #{tpu_custom_call.1} parent=1 // pred_fallthru
      _
    %224 = vsyncpa [#allocation3], 1

</llo_original>
